<compile_context>
chip_gen: v5e
topology: v5e:2x2
jax: 0.10.0
libtpu: 0.0.40
codegen_flags: <defaults>
</compile_context>

<pallas_src>
import functools

import jax
import jax.numpy as jnp
from jax.experimental import pallas as pl
from jax.experimental.pallas import tpu as pltpu


def dressed_net_kernel(x_ref, w1_ref, b1_ref, w2_ref, b2_ref, o_ref):
    """One batch tile of the fused forward pass (batch on lanes).

    x_ref:  (D, TB)  VMEM  input tile, transposed (features x batch), streamed
    w1_ref: (4, D)   VMEM  fc1 weight, torch layout (out, in), grid-resident
    b1_ref: (4,)     SMEM  fc1 bias (scalars)
    w2_ref: (8,)     SMEM  fc2 weight, torch layout (2, 4) flattened row-major
    b2_ref: (2,)     SMEM  fc2 bias (scalars)
    o_ref:  (2, TB)  VMEM  log-probabilities (classes x batch), lane-dense
    """
    # ---- fc1 on the MXU: (4, D) @ (D, TB) -> (4, TB), f32 accumulate.
    hd = jnp.dot(w1_ref[...], x_ref[...], preferred_element_type=jnp.float32)

    # ---- bias + ReLU per hidden row (b1 scalars come from SMEM).
    h0 = jnp.maximum(hd[0:1, :] + b1_ref[0], 0.0)
    h1 = jnp.maximum(hd[1:2, :] + b1_ref[1], 0.0)
    h2 = jnp.maximum(hd[2:3, :] + b1_ref[2], 0.0)
    h3 = jnp.maximum(hd[3:4, :] + b1_ref[3], 0.0)

    # ---- fc2 on the VPU: z_j = sum_k W2[j,k] * h_k + b2[j]  (8 broadcast FMAs)
    z0 = (w2_ref[0] * h0 + w2_ref[1] * h1 + w2_ref[2] * h2 + w2_ref[3] * h3
          + b2_ref[0])
    z1 = (w2_ref[4] * h0 + w2_ref[5] * h1 + w2_ref[6] * h2 + w2_ref[7] * h3
          + b2_ref[1])

    # ---- 2-class log_softmax in closed form (no XLU reductions):
    #   logp0 = -softplus(z1 - z0),  logp1 = -softplus(z0 - z1)
    # with the numerically stable softplus(t) = max(t, 0) + log1p(exp(-|t|)).
    d = z0 - z1
    sp = jnp.log1p(jnp.exp(-jnp.abs(d)))  # exp/log run on the EUP slot
    o_ref[0:1, :] = (-(jnp.maximum(-d, 0.0) + sp)).astype(o_ref.dtype)
    o_ref[1:2, :] = (-(jnp.maximum(d, 0.0) + sp)).astype(o_ref.dtype)


@functools.partial(jax.jit, static_argnames=("tb",))
def dressed_classical_net(x, w1, b1, w2, b2, *, tb=256):
    """Forward pass. x: (B, D); weights in torch layout:
    w1 (4, D), b1 (4,), w2 (2, 4), b2 (2,). Returns (B, 2) log-probs."""
    B, D = x.shape
    nb = pl.cdiv(B, tb)
    Bp = nb * tb

    # Layout plumbing in XLA (outside the kernel): batch -> lanes, pad to tile.
    x_t = x.T  # (D, B)
    if Bp != B:
        x_t = jnp.pad(x_t, ((0, 0), (0, Bp - B)))
    w2_flat = w2.reshape(-1)  # (8,) row-major (out, in)

    out_t = pl.pallas_call(
        dressed_net_kernel,
        out_shape=jax.ShapeDtypeStruct((2, Bp), jnp.float32),
        grid=(nb,),
        in_specs=[
            # streamed input tile: (D, tb), batch tiles along lanes
            pl.BlockSpec((D, tb), lambda i: (0, i)),
            # fc1 weight: DMA'd once, VMEM-resident across the whole grid
            pl.BlockSpec((4, D), lambda i: (0, 0)),
            # tiny scalar params live in SMEM
            pl.BlockSpec(memory_space=pltpu.MemorySpace.SMEM),  # b1 (4,)
            pl.BlockSpec(memory_space=pltpu.MemorySpace.SMEM),  # w2 (8,)
            pl.BlockSpec(memory_space=pltpu.MemorySpace.SMEM),  # b2 (2,)
        ],
        out_specs=pl.BlockSpec((2, tb), lambda i: (0, i)),  # lane-dense output
        compiler_params=pltpu.CompilerParams(
            # batch tiles are independent -> shard across TCs on v7x megacore
            dimension_semantics=("parallel",),
            # explicit, v7x-safe VMEM budget (tiles here are only a few KiB)
            vmem_limit_bytes=32 * 1024 * 1024,
        ),
    )(x_t, w1, b1, w2_flat, b2)

    # back to the PyTorch (B, 2) layout (cheap XLA transpose / slice)
    return out_t[:, :B].T


def init_params(input_shape, key):
    """Deterministic init mimicking torch.nn.Linear defaults (uniform
    +/- 1/sqrt(fan_in)). Weights kept in torch layout (out, in)."""
    k1, k2, k3, k4 = jax.random.split(key, 4)
    bound1 = 1.0 / jnp.sqrt(jnp.float32(input_shape))
    bound2 = 1.0 / jnp.sqrt(jnp.float32(4))
    w1 = jax.random.uniform(k1, (4, input_shape), jnp.float32, -bound1, bound1)
    b1 = jax.random.uniform(k2, (4,), jnp.float32, -bound1, bound1)
    w2 = jax.random.uniform(k3, (2, 4), jnp.float32, -bound2, bound2)
    b2 = jax.random.uniform(k4, (2,), jnp.float32, -bound2, bound2)
    return w1, b1, w2, b2


def reference_forward(x, w1, b1, w2, b2):
    """Pure-JAX reference (matches torch semantics)."""
    h = jnp.maximum(x @ w1.T + b1, 0.0)
    logits = h @ w2.T + b2
    return jax.nn.log_softmax(logits, axis=1)


if __name__ == "__main__":
    batch = 300        # deliberately NOT a multiple of the batch tile (ragged)
    input_shape = 16   # constructor arg of DressedClassicalNet
    tb = 128           # batch tile (lanes); multiple of 128 for dense stores

    key = jax.random.PRNGKey(0)
    kx, kp = jax.random.split(key)
    x = jax.random.normal(kx, (batch, input_shape), jnp.float32)
    w1, b1, w2, b2 = init_params(input_shape, kp)

    out = dressed_classical_net(x, w1, b1, w2, b2, tb=tb)
    out = jax.block_until_ready(out)

    ref = reference_forward(x, w1, b1, w2, b2)
    assert out.shape == (batch, 2)
    assert jnp.allclose(out, ref, atol=1e-5, rtol=1e-5), "mismatch vs reference"

    print("KERNEL_OK")
</pallas_src>

<mosaic_0001>
module attributes {stable_mosaic.version = 11 : i64} {
  func.func @dressed_net_kernel(%arg0: i32, %arg1: memref<16x128xf32, #tpu.memory_space<vmem>>, %arg2: memref<4x16xf32, #tpu.memory_space<vmem>>, %arg3: memref<4xf32, #tpu.memory_space<smem>>, %arg4: memref<8xf32, #tpu.memory_space<smem>>, %arg5: memref<2xf32, #tpu.memory_space<smem>>, %arg6: memref<2x128xf32, #tpu.memory_space<vmem>>) attributes {dimension_semantics = [#tpu.dimension_semantics<parallel>], iteration_bounds = array<i64: 3>, scalar_prefetch = 0 : i64, scratch_operands = 0 : i64, tpu.core_type = #tpu.core_type<tc>, window_params = [{transform_indices = @transform_0, window_bounds = array<i64: 16, 128>}, {pipeline_mode = #tpu.pipeline_mode<synchronous>, transform_indices = @transform_1, window_bounds = array<i64: 4, 16>}, {transform_indices = @transform_2, window_bounds = array<i64: 4>}, {transform_indices = @transform_3, window_bounds = array<i64: 8>}, {transform_indices = @transform_4, window_bounds = array<i64: 2>}, {transform_indices = @transform_5, window_bounds = array<i64: 2, 128>}]} {
    %c0 = arith.constant 0 : index
    %c0_0 = arith.constant 0 : index
    %0 = vector.load %arg2[%c0, %c0_0] : memref<4x16xf32, #tpu.memory_space<vmem>>, vector<4x16xf32>
    %c0_1 = arith.constant 0 : index
    %c0_2 = arith.constant 0 : index
    %1 = vector.load %arg1[%c0_1, %c0_2] : memref<16x128xf32, #tpu.memory_space<vmem>>, vector<16x128xf32>
    %cst = arith.constant dense<0.000000e+00> : vector<4x128xf32>
    %2 = tpu.matmul %0, %1, %cst {dimension_numbers = #tpu.dot_dimension_numbers<[1], [0], [0], [1], [0, 0, 1, 1], [], []>} : vector<4x16xf32>, vector<16x128xf32>, vector<4x128xf32> -> vector<4x128xf32>
    %3 = vector.extract_strided_slice %2 {offsets = [0, 0], sizes = [1, 128], strides = [1, 1]} : vector<4x128xf32> to vector<1x128xf32>
    %c0_3 = arith.constant 0 : index
    %4 = memref.load %arg3[%c0_3] : memref<4xf32, #tpu.memory_space<smem>>
    %5 = vector.broadcast %4 : f32 to vector<1x128xf32>
    %6 = arith.addf %3, %5 : vector<1x128xf32>
    %cst_4 = arith.constant 0.000000e+00 : f32
    %7 = vector.broadcast %cst_4 : f32 to vector<1x128xf32>
    %8 = arith.maximumf %6, %7 : vector<1x128xf32>
    %9 = vector.extract_strided_slice %2 {offsets = [1, 0], sizes = [1, 128], strides = [1, 1]} : vector<4x128xf32> to vector<1x128xf32>
    %c1 = arith.constant 1 : index
    %10 = memref.load %arg3[%c1] : memref<4xf32, #tpu.memory_space<smem>>
    %11 = vector.broadcast %10 : f32 to vector<1x128xf32>
    %12 = arith.addf %9, %11 : vector<1x128xf32>
    %cst_5 = arith.constant 0.000000e+00 : f32
    %13 = vector.broadcast %cst_5 : f32 to vector<1x128xf32>
    %14 = arith.maximumf %12, %13 : vector<1x128xf32>
    %15 = vector.extract_strided_slice %2 {offsets = [2, 0], sizes = [1, 128], strides = [1, 1]} : vector<4x128xf32> to vector<1x128xf32>
    %c2 = arith.constant 2 : index
    %16 = memref.load %arg3[%c2] : memref<4xf32, #tpu.memory_space<smem>>
    %17 = vector.broadcast %16 : f32 to vector<1x128xf32>
    %18 = arith.addf %15, %17 : vector<1x128xf32>
    %cst_6 = arith.constant 0.000000e+00 : f32
    %19 = vector.broadcast %cst_6 : f32 to vector<1x128xf32>
    %20 = arith.maximumf %18, %19 : vector<1x128xf32>
    %21 = vector.extract_strided_slice %2 {offsets = [3, 0], sizes = [1, 128], strides = [1, 1]} : vector<4x128xf32> to vector<1x128xf32>
    %c3 = arith.constant 3 : index
    %22 = memref.load %arg3[%c3] : memref<4xf32, #tpu.memory_space<smem>>
    %23 = vector.broadcast %22 : f32 to vector<1x128xf32>
    %24 = arith.addf %21, %23 : vector<1x128xf32>
    %cst_7 = arith.constant 0.000000e+00 : f32
    %25 = vector.broadcast %cst_7 : f32 to vector<1x128xf32>
    %26 = arith.maximumf %24, %25 : vector<1x128xf32>
    %c0_8 = arith.constant 0 : index
    %27 = memref.load %arg4[%c0_8] : memref<8xf32, #tpu.memory_space<smem>>
    %28 = vector.broadcast %27 : f32 to vector<1x128xf32>
    %29 = arith.mulf %28, %8 : vector<1x128xf32>
    %c1_9 = arith.constant 1 : index
    %30 = memref.load %arg4[%c1_9] : memref<8xf32, #tpu.memory_space<smem>>
    %31 = vector.broadcast %30 : f32 to vector<1x128xf32>
    %32 = arith.mulf %31, %14 : vector<1x128xf32>
    %33 = arith.addf %29, %32 : vector<1x128xf32>
    %c2_10 = arith.constant 2 : index
    %34 = memref.load %arg4[%c2_10] : memref<8xf32, #tpu.memory_space<smem>>
    %35 = vector.broadcast %34 : f32 to vector<1x128xf32>
    %36 = arith.mulf %35, %20 : vector<1x128xf32>
    %37 = arith.addf %33, %36 : vector<1x128xf32>
    %c3_11 = arith.constant 3 : index
    %38 = memref.load %arg4[%c3_11] : memref<8xf32, #tpu.memory_space<smem>>
    %39 = vector.broadcast %38 : f32 to vector<1x128xf32>
    %40 = arith.mulf %39, %26 : vector<1x128xf32>
    %41 = arith.addf %37, %40 : vector<1x128xf32>
    %c0_12 = arith.constant 0 : index
    %42 = memref.load %arg5[%c0_12] : memref<2xf32, #tpu.memory_space<smem>>
    %43 = vector.broadcast %42 : f32 to vector<1x128xf32>
    %44 = arith.addf %41, %43 : vector<1x128xf32>
    %c4 = arith.constant 4 : index
    %45 = memref.load %arg4[%c4] : memref<8xf32, #tpu.memory_space<smem>>
    %46 = vector.broadcast %45 : f32 to vector<1x128xf32>
    %47 = arith.mulf %46, %8 : vector<1x128xf32>
    %c5 = arith.constant 5 : index
    %48 = memref.load %arg4[%c5] : memref<8xf32, #tpu.memory_space<smem>>
    %49 = vector.broadcast %48 : f32 to vector<1x128xf32>
    %50 = arith.mulf %49, %14 : vector<1x128xf32>
    %51 = arith.addf %47, %50 : vector<1x128xf32>
    %c6 = arith.constant 6 : index
    %52 = memref.load %arg4[%c6] : memref<8xf32, #tpu.memory_space<smem>>
    %53 = vector.broadcast %52 : f32 to vector<1x128xf32>
    %54 = arith.mulf %53, %20 : vector<1x128xf32>
    %55 = arith.addf %51, %54 : vector<1x128xf32>
    %c7 = arith.constant 7 : index
    %56 = memref.load %arg4[%c7] : memref<8xf32, #tpu.memory_space<smem>>
    %57 = vector.broadcast %56 : f32 to vector<1x128xf32>
    %58 = arith.mulf %57, %26 : vector<1x128xf32>
    %59 = arith.addf %55, %58 : vector<1x128xf32>
    %c1_13 = arith.constant 1 : index
    %60 = memref.load %arg5[%c1_13] : memref<2xf32, #tpu.memory_space<smem>>
    %61 = vector.broadcast %60 : f32 to vector<1x128xf32>
    %62 = arith.addf %59, %61 : vector<1x128xf32>
    %63 = arith.subf %44, %62 : vector<1x128xf32>
    %64 = math.absf %63 : vector<1x128xf32>
    %cst_14 = arith.constant 0.000000e+00 : f32
    %65 = vector.broadcast %cst_14 : f32 to vector<1x128xf32>
    %66 = arith.subf %65, %64 : vector<1x128xf32>
    %67 = math.exp %66 : vector<1x128xf32>
    %68 = math.log1p %67 : vector<1x128xf32>
    %cst_15 = arith.constant 0.000000e+00 : f32
    %69 = vector.broadcast %cst_15 : f32 to vector<1x128xf32>
    %70 = arith.subf %69, %63 : vector<1x128xf32>
    %cst_16 = arith.constant 0.000000e+00 : f32
    %71 = vector.broadcast %cst_16 : f32 to vector<1x128xf32>
    %72 = arith.maximumf %70, %71 : vector<1x128xf32>
    %73 = arith.addf %72, %68 : vector<1x128xf32>
    %cst_17 = arith.constant 0.000000e+00 : f32
    %74 = vector.broadcast %cst_17 : f32 to vector<1x128xf32>
    %75 = arith.subf %74, %73 : vector<1x128xf32>
    %c0_18 = arith.constant 0 : index
    %c0_19 = arith.constant 0 : index
    %76 = vector.load %arg6[%c0_18, %c0_19] : memref<2x128xf32, #tpu.memory_space<vmem>>, vector<1x128xf32>
    tpu.vector_store %arg6[%c0_18, %c0_19], %75 {strides = array<i32>} : memref<2x128xf32, #tpu.memory_space<vmem>>, vector<1x128xf32>,
    %cst_20 = arith.constant 0.000000e+00 : f32
    %77 = vector.broadcast %cst_20 : f32 to vector<1x128xf32>
    %78 = arith.maximumf %63, %77 : vector<1x128xf32>
    %79 = arith.addf %78, %68 : vector<1x128xf32>
    %cst_21 = arith.constant 0.000000e+00 : f32
    %80 = vector.broadcast %cst_21 : f32 to vector<1x128xf32>
    %81 = arith.subf %80, %79 : vector<1x128xf32>
    %c1_22 = arith.constant 1 : index
    %c0_23 = arith.constant 0 : index
    %82 = vector.load %arg6[%c1_22, %c0_23] : memref<2x128xf32, #tpu.memory_space<vmem>>, vector<1x128xf32>
    tpu.vector_store %arg6[%c1_22, %c0_23], %81 {strides = array<i32>} : memref<2x128xf32, #tpu.memory_space<vmem>>, vector<1x128xf32>,
    return
  }
  func.func @transform_0(%arg0: i32) -> (i32, i32) {
    %c0_i32 = arith.constant 0 : i32
    %c0_i32_0 = arith.constant 0 : i32
    return %c0_i32, %arg0 : i32, i32
  }
  func.func @transform_1(%arg0: i32) -> (i32, i32) {
    %c0_i32 = arith.constant 0 : i32
    %c0_i32_0 = arith.constant 0 : i32
    %c0_i32_1 = arith.constant 0 : i32
    return %c0_i32, %c0_i32_0 : i32, i32
  }
  func.func @transform_2(%arg0: i32) -> i32 {
    %c0_i32 = arith.constant 0 : i32
    %c0_i32_0 = arith.constant 0 : i32
    return %c0_i32 : i32
  }
  func.func @transform_3(%arg0: i32) -> i32 {
    %c0_i32 = arith.constant 0 : i32
    %c0_i32_0 = arith.constant 0 : i32
    return %c0_i32 : i32
  }
  func.func @transform_4(%arg0: i32) -> i32 {
    %c0_i32 = arith.constant 0 : i32
    %c0_i32_0 = arith.constant 0 : i32
    return %c0_i32 : i32
  }
  func.func @transform_5(%arg0: i32) -> (i32, i32) {
    %c0_i32 = arith.constant 0 : i32
    %c0_i32_0 = arith.constant 0 : i32
    return %c0_i32, %arg0 : i32, i32
  }
}

</mosaic_0001>

<llo_original>
// kernel: dressed_classical_net.1
$region0: #{dressed_classical_net.1}
  #allocation0 [shape = 'u32[]', space=smem, size = 0x4, offset = 0x4, fixed_abs, tag = 'smem constant byte address 0x4 - core index']
  #allocation1 [shape = 'u32[72,128]{1,0:T(1,128)}', space=vmem, size = 0x9000, scoped, tag = 'internal scratch']
  %s0 = inlined_call_operand.vmem [shape: f32[16,384], index: 0, kind: input, shape index: {}]
  %s1 = inlined_call_operand.vmem [shape: f32[4,16], index: 1, kind: input, shape index: {}]
  %s2 = inlined_call_operand.vmem [shape: f32[4], index: 2, kind: input, shape index: {}]
  %s3 = inlined_call_operand.vmem [shape: f32[8], index: 3, kind: input, shape index: {}]
  %s4 = inlined_call_operand.vmem [shape: f32[2], index: 4, kind: input, shape index: {}]
  %s5 = inlined_call_operand.vmem [shape: f32[2,384], index: 5, kind: output, shape index: {}]
  %s6 = sld [smem:[#allocation0]]
  $region103: #{dressed_classical_net.1} parent=0
    _
  %s8 = ssub.s32 1, %s6
  %s9 = scalar_select 0, %s8, %s6
  $region1: #{dressed_classical_net.1} parent=0
    #allocation2 [shape = 'u8[16384]{0}', space=vmem, size = 0x4000, scoped, tag = 'input window, operand 0']
    #allocation3 [shape = 'u8[512]{0}', space=smem, size = 0x200, scoped, tag = 'input window, operand 2, single buffered']
    #allocation4 [shape = 's32[2]{0}', space=sflag, size = 0x8, scoped, tag = 'scoped memory for dressed_classical_net.1']
    #allocation5 [shape = 'u8[512]{0}', space=smem, size = 0x200, scoped, tag = 'input window, operand 3, single buffered']
    #allocation6 [shape = 's32[1]{0}', space=sflag, size = 0x4, scoped, tag = 'scoped memory for dressed_classical_net.1']
    #allocation7 [shape = 'u8[512]{0}', space=smem, size = 0x200, scoped, tag = 'input window, operand 4, single buffered']
    %10 = vsyncpa [#allocation4], 0
    %11 = vsyncpa [#allocation6], 0
    loop: start=0, step=1, limit=5
    $region2: #{dressed_classical_net.1} parent=1 // loop_pre_header
      _
    $region3: #{dressed_classical_net.1} parent=1 // loop_header
      %s13 = sphi 0, %s17
      %p14 = scmp.ge.s32.totalorder %s13, 5
      %s23 = sphi 0, %s25
      %s26 = sphi 0, %s23
      %s27 = sphi 0, %s26
      %s43 = sphi 0, %s27
      %s47 = sphi 0, %s47
      %s49 = sphi 0, %s47
      %s50 = sphi 0, %s49
      %s64 = sphi 0, %s50
      %s68 = sphi 0, %s68
      %s70 = sphi 0, %s68
      %s71 = sphi 0, %s70
      %s85 = sphi 0, %s71
      %s89 = sphi 0, %s89
      %s91 = sphi 0, %s89
      %s92 = sphi 0, %s91
      %s106 = sphi 0, %s92
      %s110 = sphi 0, %s110
      %s112 = sphi 0, %s110
      %s113 = sphi 0, %s112
      %s127 = sphi 0, %s113
      %s133 = sphi 0, %s135
      %s136 = sphi 0, %s133
      %s137 = sphi 0, %s136
      %s153 = sphi 0, %s137
    $region4: #{dressed_classical_net.1} parent=1 // loop_header_branch
      %16 = sbr.rel (%p14) target = $region8
    $region5: #{dressed_classical_net.1} parent=1 // loop_body
      %s18 = ssub.s32 %s13, 1
      %s19 = ssub.s32 %s13, 2
      %s20 = sadd.s32 %s13, 1
      %s21 = ssub.s32 %s13, %s20
      %p22 = scmp.eq.s32.totalorder %s21, 0
      %s24 = sadd.s32 %s23, 1
      %s25 = scalar_select %p22, %s23, %s24
      %p28 = pneg %p22
      %p29 = scmp.eq.s32.totalorder %s13, 2
      %p30 = por %p28, %p29
      %p31 = scmp.ne.s32.totalorder %s23, %s26
      %p32 = scmp.eq.s32.totalorder %s13, 0
      %p33 = por %p31, %p32
      %p34 = scmp.ne.s32.totalorder %s23, %s26
      %p35 = scmp.eq.s32.totalorder %s18, 2
      %p36 = por %p34, %p35
      %p37 = scmp.ne.s32.totalorder %s26, %s27
      %p38 = scmp.eq.s32.totalorder %s18, 0
      %p39 = por %p37, %p38
      %p40 = scmp.ne.s32.totalorder %s26, %s27
      %p41 = scmp.eq.s32.totalorder %s19, 2
      %p42 = por %p40, %p41
      %p44 = scmp.ne.s32.totalorder %s27, %s43
      %p45 = scmp.eq.s32.totalorder %s19, 0
      %p46 = por %p44, %p45
      %s48 = sadd.s32 %s47, 1
      %p51 = scmp.eq.s32.totalorder %s13, 2
      %p52 = scmp.ne.s32.totalorder %s47, %s49
      %p53 = scmp.eq.s32.totalorder %s13, 0
      %p54 = por %p52, %p53
      %p55 = scmp.ne.s32.totalorder %s47, %s49
      %p56 = scmp.eq.s32.totalorder %s18, 2
      %p57 = por %p55, %p56
      %p58 = scmp.ne.s32.totalorder %s49, %s50
      %p59 = scmp.eq.s32.totalorder %s18, 0
      %p60 = por %p58, %p59
      %p61 = scmp.ne.s32.totalorder %s49, %s50
      %p62 = scmp.eq.s32.totalorder %s19, 2
      %p63 = por %p61, %p62
      %p65 = scmp.ne.s32.totalorder %s50, %s64
      %p66 = scmp.eq.s32.totalorder %s19, 0
      %p67 = por %p65, %p66
      %s69 = sadd.s32 %s68, 1
      %p72 = scmp.eq.s32.totalorder %s13, 2
      %p73 = scmp.ne.s32.totalorder %s68, %s70
      %p74 = scmp.eq.s32.totalorder %s13, 0
      %p75 = por %p73, %p74
      %p76 = scmp.ne.s32.totalorder %s68, %s70
      %p77 = scmp.eq.s32.totalorder %s18, 2
      %p78 = por %p76, %p77
      %p79 = scmp.ne.s32.totalorder %s70, %s71
      %p80 = scmp.eq.s32.totalorder %s18, 0
      %p81 = por %p79, %p80
      %p82 = scmp.ne.s32.totalorder %s70, %s71
      %p83 = scmp.eq.s32.totalorder %s19, 2
      %p84 = por %p82, %p83
      %p86 = scmp.ne.s32.totalorder %s71, %s85
      %p87 = scmp.eq.s32.totalorder %s19, 0
      %p88 = por %p86, %p87
      %s90 = sadd.s32 %s89, 1
      %p93 = scmp.eq.s32.totalorder %s13, 2
      %p94 = scmp.ne.s32.totalorder %s89, %s91
      %p95 = scmp.eq.s32.totalorder %s13, 0
      %p96 = por %p94, %p95
      %p97 = scmp.ne.s32.totalorder %s89, %s91
      %p98 = scmp.eq.s32.totalorder %s18, 2
      %p99 = por %p97, %p98
      %p100 = scmp.ne.s32.totalorder %s91, %s92
      %p101 = scmp.eq.s32.totalorder %s18, 0
      %p102 = por %p100, %p101
      %p103 = scmp.ne.s32.totalorder %s91, %s92
      %p104 = scmp.eq.s32.totalorder %s19, 2
      %p105 = por %p103, %p104
      %p107 = scmp.ne.s32.totalorder %s92, %s106
      %p108 = scmp.eq.s32.totalorder %s19, 0
      %p109 = por %p107, %p108
      %s111 = sadd.s32 %s110, 1
      %p114 = scmp.eq.s32.totalorder %s13, 2
      %p115 = scmp.ne.s32.totalorder %s110, %s112
      %p116 = scmp.eq.s32.totalorder %s13, 0
      %p117 = por %p115, %p116
      %p118 = scmp.ne.s32.totalorder %s110, %s112
      %p119 = scmp.eq.s32.totalorder %s18, 2
      %p120 = por %p118, %p119
      %p121 = scmp.ne.s32.totalorder %s112, %s113
      %p122 = scmp.eq.s32.totalorder %s18, 0
      %p123 = por %p121, %p122
      %p124 = scmp.ne.s32.totalorder %s112, %s113
      %p125 = scmp.eq.s32.totalorder %s19, 2
      %p126 = por %p124, %p125
      %p128 = scmp.ne.s32.totalorder %s113, %s127
      %p129 = scmp.eq.s32.totalorder %s19, 0
      %p130 = por %p128, %p129
      %s131 = ssub.s32 %s13, %s20
      %p132 = scmp.eq.s32.totalorder %s131, 0
      %s134 = sadd.s32 %s133, 1
      %s135 = scalar_select %p132, %s133, %s134
      %p138 = pneg %p132
      %p139 = scmp.eq.s32.totalorder %s13, 2
      %p140 = por %p138, %p139
      %p141 = scmp.ne.s32.totalorder %s133, %s136
      %p142 = scmp.eq.s32.totalorder %s13, 0
      %p143 = por %p141, %p142
      %p144 = scmp.ne.s32.totalorder %s133, %s136
      %p145 = scmp.eq.s32.totalorder %s18, 2
      %p146 = por %p144, %p145
      %p147 = scmp.ne.s32.totalorder %s136, %s137
      %p148 = scmp.eq.s32.totalorder %s18, 0
      %p149 = por %p147, %p148
      %p150 = scmp.ne.s32.totalorder %s136, %s137
      %p151 = scmp.eq.s32.totalorder %s19, 2
      %p152 = por %p150, %p151
      %p154 = scmp.ne.s32.totalorder %s137, %s153
      %p155 = scmp.eq.s32.totalorder %s19, 0
      %p156 = por %p154, %p155
      %p157 = scmp.le.s32.totalorder 1, %s13
      %p158 = scmp.lt.s32.totalorder %s13, 4
      %p159 = pnand %p157, %p158
      %p160 = pneg %p159
      // Predicated region
      $region9: #{dressed_classical_net.1} parent=5 // pred_check
        _
      $region10: #{dressed_classical_net.1} parent=5 // pred_check_branch
        %162 = sbr.rel (%p159) target = $region12
      $region11: #{dressed_classical_net.1} parent=5 // pred_region
        %s163 = ssub.s32 %s13, 1
        // Predicated region
        $region13: #{dressed_classical_net.1} parent=11 // pred_check
          %p164 = pneg %p60
        $region14: #{dressed_classical_net.1} parent=11 // pred_check_branch
          %166 = sbr.rel (%p164) target = $region16
        $region15: #{dressed_classical_net.1} parent=11 // pred_region
          _
        $region16: #{dressed_classical_net.1} parent=11 // pred_fallthru
          _
        // Predicated region
        $region17: #{dressed_classical_net.1} parent=11 // pred_check
          %p167 = pneg %p81
        $region18: #{dressed_classical_net.1} parent=11 // pred_check_branch
          %169 = sbr.rel (%p167) target = $region20
        $region19: #{dressed_classical_net.1} parent=11 // pred_region
          %171 = vsyncadd [#allocation4], 0
          %s173 = sshll.u32 %s2, 4
          %s174 = int_to_ptr.vmem [resolvable:$true] %s173
          %176 = dma.vmem_to_smem %s174, 16, [#allocation3], [#allocation4]
        $region20: #{dressed_classical_net.1} parent=11 // pred_fallthru
          _
        // Predicated region
        $region21: #{dressed_classical_net.1} parent=11 // pred_check
          %p177 = pneg %p102
        $region22: #{dressed_classical_net.1} parent=11 // pred_check_branch
          %179 = sbr.rel (%p177) target = $region24
        $region23: #{dressed_classical_net.1} parent=11 // pred_region
          %181 = vsyncadd [#allocation6], 0
          %s183 = sshll.u32 %s3, 4
          %s184 = int_to_ptr.vmem [resolvable:$true] %s183
          %186 = dma.vmem_to_smem %s184, 16, [#allocation5], [#allocation6]
        $region24: #{dressed_classical_net.1} parent=11 // pred_fallthru
          _
        // Predicated region
        $region25: #{dressed_classical_net.1} parent=11 // pred_check
          %p187 = pneg %p123
        $region26: #{dressed_classical_net.1} parent=11 // pred_check_branch
          %189 = sbr.rel (%p187) target = $region28
        $region27: #{dressed_classical_net.1} parent=11 // pred_region
          %191 = vsyncadd [#allocation6], 0
          %s193 = sshll.u32 %s4, 4
          %s194 = int_to_ptr.vmem [resolvable:$true] %s193
          %196 = dma.vmem_to_smem %s194, 16, [#allocation7], [#allocation6]
        $region28: #{dressed_classical_net.1} parent=11 // pred_fallthru
          _
      $region12: #{dressed_classical_net.1} parent=5 // pred_fallthru
        _
      %p197 = scmp.lt.s32.totalorder %s13, 3
      // Predicated region
      $region29: #{dressed_classical_net.1} parent=5 // pred_check
        %p198 = pneg %p197
      $region30: #{dressed_classical_net.1} parent=5 // pred_check_branch
        %200 = sbr.rel (%p198) target = $region32
      $region31: #{dressed_classical_net.1} parent=5 // pred_region
        // Predicated region
        $region33: #{dressed_classical_net.1} parent=31 // pred_check
          %p201 = pneg %p33
        $region34: #{dressed_classical_net.1} parent=31 // pred_check_branch
          %203 = sbr.rel (%p201) target = $region36
        $region35: #{dressed_classical_net.1} parent=31 // pred_region
          %s204 = sand.u32 %s23, 1
          %s205 = sand.u32 %s23, 1
          %s206 = smul.addr %s205, 16
          %s207 = scalar_lea.vmem [#allocation2], %s206
          %s208 = smul.addr %s13, 8
          %s209 = scalar_lea.vmem %s0, %s208
          // Predicated region
          $region37: #{dressed_classical_net.1} parent=35 // pred_check
            _
          $region38: #{dressed_classical_net.1} parent=35 // pred_check_branch
            %211 = sbr.rel (0) target = $region40
          $region39: #{dressed_classical_net.1} parent=35 // pred_region
            // Predicated region
            $region41: #{dressed_classical_net.1} parent=39 // pred_check
              _
            $region42: #{dressed_classical_net.1} parent=39 // pred_check_branch
              %213 = sbr.rel (0) target = $region44
            $region43: #{dressed_classical_net.1} parent=39 // pred_region
              // Predicated region
              $region56: #{dressed_classical_net.1} parent=43 // pred_check
                _
              $region57: #{dressed_classical_net.1} parent=43 // pred_check_branch
                %231 = sbr.rel (0) target = $region59
              $region58: #{dressed_classical_net.1} parent=43 // pred_region
                loop: start=0, step=1, limit=1
                $region60: #{dressed_classical_net.1} parent=58 // loop_pre_header
                  _
                $region61: #{dressed_classical_net.1} parent=58 // loop_header
                  %s233 = sphi 0, %s237
                  %p234 = scmp.ge.s32.totalorder %s233, 1
                  %s238 = sphi %s209, %s209
                  %s239 = sphi %s207, %s207
                $region62: #{dressed_classical_net.1} parent=58 // loop_header_branch
                  %236 = sbr.rel (%p234) target = $region66
                $region63: #{dressed_classical_net.1} parent=58 // loop_body
                  %v240 = vld [vmem:[%s238] sm:$0xff]
                  %241 = vst [vmem:[%s239] sm:$0xff] %v240
                  %v242 = vld [vmem:[%s238 + $0x18] sm:$0xff]
                  %243 = vst [vmem:[%s239 + $0x8] sm:$0xff] %v242
                $region64: #{dressed_classical_net.1} parent=58 // loop_footer
                  %s237 = sadd.s32 1, %s233
                $region65: #{dressed_classical_net.1} parent=58 // loop_footer_branch
                  %232 = sbr.rel target = $region61
                $region66: #{dressed_classical_net.1} parent=58 // loop_exit
                  _
              $region59: #{dressed_classical_net.1} parent=43 // pred_fallthru
                _
              // Predicated region
              $region67: #{dressed_classical_net.1} parent=43 // pred_check
                _
              $region68: #{dressed_classical_net.1} parent=43 // pred_check_branch
                %245 = sbr.rel target = $region70
              $region69: #{dressed_classical_net.1} parent=43 // pred_region
                _
              $region70: #{dressed_classical_net.1} parent=43 // pred_fallthru
                _
            $region44: #{dressed_classical_net.1} parent=39 // pred_fallthru
              _
            // Predicated region
            $region45: #{dressed_classical_net.1} parent=39 // pred_check
              _
            $region46: #{dressed_classical_net.1} parent=39 // pred_check_branch
              %215 = sbr.rel target = $region48
            $region47: #{dressed_classical_net.1} parent=39 // pred_region
              %s217 = ssub.s32 256, 1
              loop: start=0, step=1, limit=1
              $region49: #{dressed_classical_net.1} parent=47 // loop_pre_header
                _
              $region50: #{dressed_classical_net.1} parent=47 // loop_header
                %s219 = sphi 0, %s223
                %p220 = scmp.ge.s32.totalorder %s219, 1
                %s224 = sphi %s209, %s209
                %s225 = sphi %s207, %s207
              $region51: #{dressed_classical_net.1} parent=47 // loop_header_branch
                %222 = sbr.rel (%p220) target = $region55
              $region52: #{dressed_classical_net.1} parent=47 // loop_body
                %v226 = vld [vmem:[%s224] sm:%s217]
                %227 = vst [vmem:[%s225] sm:%s217] %v226
                %v228 = vld [vmem:[%s224 + $0x18] sm:%s217]
                %229 = vst [vmem:[%s225 + $0x8] sm:%s217] %v228
              $region53: #{dressed_classical_net.1} parent=47 // loop_footer
                %s223 = sadd.s32 1, %s219
              $region54: #{dressed_classical_net.1} parent=47 // loop_footer_branch
                %218 = sbr.rel target = $region50
              $region55: #{dressed_classical_net.1} parent=47 // loop_exit
                _
            $region48: #{dressed_classical_net.1} parent=39 // pred_fallthru
              _
          $region40: #{dressed_classical_net.1} parent=35 // pred_fallthru
            _
          %246 = vnop
        $region36: #{dressed_classical_net.1} parent=31 // pred_fallthru
          _
      $region32: #{dressed_classical_net.1} parent=5 // pred_fallthru
        _
      %p247 = scmp.le.s32.totalorder 1, %s13
      %p248 = scmp.lt.s32.totalorder %s13, 4
      %p249 = pnand %p247, %p248
      %p250 = pneg %p249
      // Predicated region
      $region71: #{dressed_classical_net.1} parent=5 // pred_check
        _
      $region72: #{dressed_classical_net.1} parent=5 // pred_check_branch
        %252 = sbr.rel (%p249) target = $region74
      $region73: #{dressed_classical_net.1} parent=5 // pred_region
        %s253 = ssub.s32 %s13, 1
        %s254 = sand.u32 %s26, 1
        %s255 = sand.u32 %s26, 1
        %s256 = smul.addr %s255, 16
        %s257 = scalar_lea.vmem [#allocation2], %s256
        // Predicated region
        $region75: #{dressed_classical_net.1} parent=73 // pred_check
          %p258 = pneg %p39
        $region76: #{dressed_classical_net.1} parent=73 // pred_check_branch
          %260 = sbr.rel (%p258) target = $region78
        $region77: #{dressed_classical_net.1} parent=73 // pred_region
          _
        $region78: #{dressed_classical_net.1} parent=73 // pred_fallthru
          _
        // Predicated region
        $region79: #{dressed_classical_net.1} parent=73 // pred_check
          %p261 = pneg %p81
        $region80: #{dressed_classical_net.1} parent=73 // pred_check_branch
          %263 = sbr.rel (%p261) target = $region82
        $region81: #{dressed_classical_net.1} parent=73 // pred_region
          %265 = dma.done [#allocation4], 16
        $region82: #{dressed_classical_net.1} parent=73 // pred_fallthru
          _
        // Predicated region
        $region83: #{dressed_classical_net.1} parent=73 // pred_check
          %p266 = pneg %p102
        $region84: #{dressed_classical_net.1} parent=73 // pred_check_branch
          %268 = sbr.rel (%p266) target = $region86
        $region85: #{dressed_classical_net.1} parent=73 // pred_region
          %270 = dma.done [#allocation6], 16
        $region86: #{dressed_classical_net.1} parent=73 // pred_fallthru
          _
        // Predicated region
        $region87: #{dressed_classical_net.1} parent=73 // pred_check
          %p271 = pneg %p123
        $region88: #{dressed_classical_net.1} parent=73 // pred_check_branch
          %273 = sbr.rel (%p271) target = $region90
        $region89: #{dressed_classical_net.1} parent=73 // pred_region
          %275 = dma.done [#allocation6], 16
        $region90: #{dressed_classical_net.1} parent=73 // pred_fallthru
          _
        %276 = sfence
        %s277 = sand.u32 %s26, 1
        %s278 = sand.u32 %s26, 1
        %s279 = smul.addr %s278, 16
        %s280 = scalar_lea.vmem [#allocation2], %s279
        %p281 = pneg %p39
        %p282 = pneg %p36
        %p283 = pneg %p60
        %p284 = pneg %p57
        %p285 = pneg %p81
        %p286 = pneg %p78
        %p287 = pneg %p102
        %p288 = pneg %p99
        %p289 = pneg %p123
        %p290 = pneg %p120
        %p291 = pneg %p149
        %p292 = pneg %p146
        %p293 = scmp.lt.s32.totalorder %s18, 2
        %s294 = scalar_select %p293, %s18, 2
        %s295 = smul.addr %s294, 2
        %s296 = scalar_lea.vmem %s5, %s295
        %p297 = scmp.lt.s32.totalorder %s18, 2
        %s298 = scalar_select %p297, %s18, 2
        %s299 = smul.addr %s298, 2
        %s300 = scalar_lea.vmem %s5, %s299
        %v301 = vld [vmem:[%s1] sm:$0xf]
        %v302 = vld [vmem:[%s257] sm:$0xff]
        %v303 = vld [vmem:[%s257 + $0x8] sm:$0xff]
        %vm304 = vcmask 130048
        %v306 = vsel %vm304, %v301, 0
        %308 = vmatpush.msra.mxu0 0.0
        %309 = vmatpush.msra.mxu0 0.0
        %310 = vmatpush.msra.mxu0 0.0
        %311 = vmatpush.msra.mxu0 0.0
        %312 = vmatpush.msra.mxu0 0.0
        %313 = vmatpush.msra.mxu0 0.0
        %314 = vmatpush.msra.mxu0 0.0
        %315 = vmatpush.msra.mxu0 0.0
        %316 = vmatpush.msra.mxu0 0.0
        %317 = vmatpush.msra.mxu0 0.0
        %318 = vmatpush.msra.mxu0 0.0
        %319 = vmatpush.msra.mxu0 0.0
        %320 = vmatpush.msra.mxu0 0.0
        %321 = vmatpush.msra.mxu0 0.0
        %322 = vmatpush.msra.mxu0 %v303
        %323 = vmatpush.msra.mxu0 %v302
        %324 = vmatmul.f32.gmra.mxu0 %v306
        %v325 = vpop.f32.mrf.mxu0
        %v326 = vadd.f32 0.0, %v325
        %327 = vdwg.mxu0
        %s328 = sld [smem:[#allocation3]]
        %v329 = vstv %s328
        %v330 = vadd.f32 %v326, %v329
        %v331 = vmax.f32 %v330, 0.0
        %s332 = sld [smem:[#allocation3 + $0x1]]
        %v333 = vstv %s332
        %v334 = vadd.f32 %v326, %v333
        %v335 = vmax.f32 %v334, 0.0
        %s336 = sld [smem:[#allocation3 + $0x2]]
        %v337 = vstv %s336
        %v338 = vadd.f32 %v326, %v337
        %v339 = vmax.f32 %v338, 0.0
        %s340 = sld [smem:[#allocation3 + $0x3]]
        %v341 = vstv %s340
        %v342 = vadd.f32 %v326, %v341
        %v343 = vmax.f32 %v342, 0.0
        %s344 = sld [smem:[#allocation5]]
        %v345 = vstv %s344
        %v346 = vmul.f32 %v345, %v331
        %s347 = sld [smem:[#allocation5 + $0x1]]
        %v348 = vstv %s347
        %v349 = vmul.f32 %v348, %v335
        %v351 = vrot.slane %v349, 1
        %v353 = vadd.f32 %v346, %v351
        %s354 = sld [smem:[#allocation5 + $0x2]]
        %v355 = vstv %s354
        %v356 = vmul.f32 %v355, %v339
        %v358 = vrot.slane %v356, 2
        %v360 = vadd.f32 %v353, %v358
        %s361 = sld [smem:[#allocation5 + $0x3]]
        %v362 = vstv %s361
        %v363 = vmul.f32 %v362, %v343
        %v365 = vrot.slane %v363, 3
        %v367 = vadd.f32 %v360, %v365
        %s368 = sld [smem:[#allocation7]]
        %v369 = vstv %s368
        %v370 = vadd.f32 %v367, %v369
        %s371 = sld [smem:[#allocation5 + $0x4]]
        %v372 = vstv %s371
        %v373 = vmul.f32 %v372, %v331
        %s374 = sld [smem:[#allocation5 + $0x5]]
        %v375 = vstv %s374
        %v376 = vmul.f32 %v375, %v335
        %v378 = vrot.slane %v376, 1
        %v380 = vadd.f32 %v373, %v378
        %s381 = sld [smem:[#allocation5 + $0x6]]
        %v382 = vstv %s381
        %v383 = vmul.f32 %v382, %v339
        %v385 = vrot.slane %v383, 2
        %v387 = vadd.f32 %v380, %v385
        %s388 = sld [smem:[#allocation5 + $0x7]]
        %v389 = vstv %s388
        %v390 = vmul.f32 %v389, %v343
        %v392 = vrot.slane %v390, 3
        %v394 = vadd.f32 %v387, %v392
        %s395 = sld [smem:[#allocation7 + $0x1]]
        %v396 = vstv %s395
        %v397 = vadd.f32 %v394, %v396
        %v398 = vsub.f32 %v370, %v397
        %v399 = vand.u32 2147483647, %v398
        %v400 = vsub.f32 0.0, %v399
        %v401 = vmul.f32 %v400, 1.442695
        %v402 = vpow.pop %v401
        %v403 = vadd.f32 %v402, 1.0
        %v404 = vlog2.pop %v403
        %v405 = vmul.f32 %v404, 0.6931472
        %v406 = vmul.f32 -0.5, %v402
        %v407 = vadd.f32 %v406, 1.0
        %v408 = vmul.f32 %v407, %v402
        %v409 = vand.u32 2147483647, %v402
        %vm410 = vcmp.lt.f32.partialorder %v409, 0.0004427343
        %v411 = vsel %vm410, %v408, %v405
        %v412 = vsub.f32 0.0, %v398
        %v413 = vmax.f32 %v412, 0.0
        %v414 = vadd.f32 %v413, %v411
        %v415 = vsub.f32 0.0, %v414
        %416 = vst [vmem:[%s300] sm:$0x1] %v415
        %v417 = vmax.f32 %v398, 0.0
        %v418 = vadd.f32 %v417, %v411
        %v419 = vsub.f32 0.0, %v418
        %420 = vst [vmem:[%s300 + $0x1] sm:$0x1] %v419
        %p421 = scmp.lt.s32.totalorder %s18, 2
        %s422 = scalar_select %p421, %s18, 2
        %s423 = smul.addr %s422, 2
        %s424 = scalar_lea.vmem %s5, %s423
        // Predicated region
        $region91: #{dressed_classical_net.1} parent=73 // pred_check
          %p425 = pneg %p146
        $region92: #{dressed_classical_net.1} parent=73 // pred_check_branch
          %427 = sbr.rel (%p425) target = $region94
        $region93: #{dressed_classical_net.1} parent=73 // pred_region
          _
        $region94: #{dressed_classical_net.1} parent=73 // pred_fallthru
          _
      $region74: #{dressed_classical_net.1} parent=5 // pred_fallthru
        _
      %p428 = scmp.le.s32.totalorder 2, %s13
      // Predicated region
      $region95: #{dressed_classical_net.1} parent=5 // pred_check
        %p429 = pneg %p428
      $region96: #{dressed_classical_net.1} parent=5 // pred_check_branch
        %431 = sbr.rel (%p429) target = $region98
      $region97: #{dressed_classical_net.1} parent=5 // pred_region
        %s432 = ssub.s32 %s13, 2
        // Predicated region
        $region99: #{dressed_classical_net.1} parent=97 // pred_check
          %p433 = pneg %p152
        $region100: #{dressed_classical_net.1} parent=97 // pred_check_branch
          %435 = sbr.rel (%p433) target = $region102
        $region101: #{dressed_classical_net.1} parent=97 // pred_region
          %p436 = scmp.lt.s32.totalorder %s19, 2
          %s437 = scalar_select %p436, %s19, 2
          %s438 = smul.addr %s437, 2
          %s439 = scalar_lea.vmem %s5, %s438
        $region102: #{dressed_classical_net.1} parent=97 // pred_fallthru
          _
      $region98: #{dressed_classical_net.1} parent=5 // pred_fallthru
        _
    $region6: #{dressed_classical_net.1} parent=1 // loop_footer
      %s17 = sadd.s32 1, %s13
    $region7: #{dressed_classical_net.1} parent=1 // loop_footer_branch
      %12 = sbr.rel target = $region3
    $region8: #{dressed_classical_net.1} parent=1 // loop_exit
      _
    %440 = vsyncpa [#allocation4], 1
    %s441 = scalar_lea.sflag [#allocation4], 1
    %442 = vsyncpa %s441, 1
    %443 = vsyncpa [#allocation6], 1

</llo_original>
